<compile_context>
chip_gen: v6e
topology: v6e:2x2x1
jax: 0.10.0
libtpu: 0.0.40
codegen_flags: <defaults>
</compile_context>

<pallas_src>
import functools

import jax
import jax.numpy as jnp
from jax import lax
from jax.experimental import pallas as pl
from jax.experimental.pallas import tpu as pltpu

BN_EPS = 1e-5
LEAKY_SLOPE = 0.01  # F.leaky_relu default negative_slope


def _round_up(x, m):
    return (x + m - 1) // m * m


def _vmem_padded_bytes(shape, dtype_bytes=4):
    """Rough VMEM footprint of an f32 buffer, honoring (8, 128) tile padding."""
    shape = tuple(shape)
    if len(shape) == 1:
        shape = (1,) + shape
    lead = 1
    for d in shape[:-2]:
        lead *= d
    sub = _round_up(max(shape[-2], 1), 8)
    lane = _round_up(max(shape[-1], 1), 128)
    return lead * sub * lane * dtype_bytes


def mlp_decoder_kernel(x_ref, w1_ref, gamma_ref, beta_ref, w2t_ref, b2_ref,
                       out_ref, stats_ref, coef_ref, *hcache,
                       batch_size, tile_rows, cache_h, needs_mask):
    phase = pl.program_id(0)   # 0: fc1 + BN statistics, 1: BN affine + LeakyReLU + fc2
    tile = pl.program_id(1)    # batch-tile index

    @pl.when(jnp.logical_and(phase == 0, tile == 0))
    def _init_stats():
        stats_ref[...] = jnp.zeros_like(stats_ref)

    @pl.when(phase == 0)
    def _stats_pass():
        # fc1 on the MXU with f32 accumulation.  fc1 bias is intentionally omitted: a
        # per-feature constant cancels exactly under training-mode BatchNorm (h - mean).
        h = jnp.dot(x_ref[...], w1_ref[...], preferred_element_type=jnp.float32)
        if cache_h:
            hcache[0][tile] = h

        # Per-feature shift (first valid batch row) for numerically-stable variance.
        @pl.when(tile == 0)
        def _set_shift():
            stats_ref[2, :] = h[0, :]

        d = h - stats_ref[2, :]
        if needs_mask:
            row = tile * tile_rows + lax.broadcasted_iota(jnp.int32, (tile_rows, 1), 0)
            d = jnp.where(row < batch_size, d, 0.0)   # mask padded / ragged rows
        stats_ref[0, :] = stats_ref[0, :] + jnp.sum(d, axis=0)
        stats_ref[1, :] = stats_ref[1, :] + jnp.sum(d * d, axis=0)

    @pl.when(jnp.logical_and(phase == 1, tile == 0))
    def _finalize_stats():
        inv_n = 1.0 / float(batch_size)
        d_mean = stats_ref[0, :] * inv_n
        var = jnp.maximum(stats_ref[1, :] * inv_n - d_mean * d_mean, 0.0)  # biased var
        mean = stats_ref[2, :] + d_mean
        scale = gamma_ref[0, :] * lax.rsqrt(var + BN_EPS)                  # EUP rsqrt
        coef_ref[0, :] = scale
        coef_ref[1, :] = beta_ref[0, :] - mean * scale

    @pl.when(phase == 1)
    def _apply():
        if cache_h:
            h = hcache[0][tile]                       # cached fc1 output, no re-compute
        else:
            h = jnp.dot(x_ref[...], w1_ref[...], preferred_element_type=jnp.float32)
        hn = h * coef_ref[0, :] + coef_ref[1, :]      # fused BN affine
        hn = jnp.maximum(hn, LEAKY_SLOPE * hn)        # LeakyReLU (slope < 1)
        y = jnp.sum(hn * w2t_ref[...], axis=-1) + b2_ref[0, 0]   # fc2 as lane reduce
        out_ref[0, :] = y.astype(out_ref.dtype)


def mlp_decoder(x, w1, b1, gamma, beta, w2, b2, *,
                max_batch_tile=1024, hcache_budget_bytes=32 * 1024 * 1024):
    """Fused MLPDecoder forward (BatchNorm in training mode, eps=1e-5).

    x: (B, in_dim); w1: (in_dim, hidden); b1/gamma/beta: (hidden,) or (1, hidden);
    w2: (hidden, 1); b2: scalar-like.  Returns (B, 1) float32.
    """
    assert max_batch_tile % 128 == 0, "max_batch_tile must be a multiple of 128"
    del b1  # exact no-op under training-mode BatchNorm (cancels in h - mean)

    B, in_dim = x.shape
    hidden = w1.shape[1]
    f32 = jnp.float32

    TB = min(max_batch_tile, _round_up(B, 8))     # sublane-aligned batch tile
    num_tiles = (B + TB - 1) // TB
    Bp = num_tiles * TB
    needs_mask = (Bp != B)

    # No padded copies of the inputs: blocks use full-extent trailing dims.
    x = jnp.asarray(x, f32)
    w1 = jnp.asarray(w1, f32)
    g = jnp.reshape(gamma, (1, hidden)).astype(f32)
    bt = jnp.reshape(beta, (1, hidden)).astype(f32)
    w2t = jnp.reshape(w2, (1, hidden)).astype(f32)
    b2s = jnp.reshape(jnp.asarray(b2, f32), (1, 1))

    # h-cache (phase 0 -> phase 1) if it fits the VMEM budget, else recompute fc1.
    hcache_bytes = _vmem_padded_bytes((num_tiles, TB, hidden))
    cache_h = hcache_bytes <= hcache_budget_bytes

    vmem_est = (2 * _vmem_padded_bytes((TB, in_dim))        # x (double-buffered)
                + 2 * _vmem_padded_bytes((in_dim, hidden))  # W1 (index-constant)
                + 3 * 2 * _vmem_padded_bytes((1, hidden))   # gamma / beta / w2 row
                + 2 * _vmem_padded_bytes((1, TB))           # output row
                + _vmem_padded_bytes((3, hidden))           # stats scratch
                + _vmem_padded_bytes((2, hidden)))          # BN affine coefficients
    if cache_h:
        vmem_est += hcache_bytes
    vmem_limit = int(min(max(2 * vmem_est, 32 * 1024 * 1024), 100 * 1024 * 1024))

    if cache_h:
        # Phase 1 never re-streams x: index collapses to block 0, so no further DMAs.
        x_index = lambda p, t: (t * (1 - p), 0)
    else:
        x_index = lambda p, t: (t, 0)
    const = lambda p, t: (0, 0)

    in_specs = [
        pl.BlockSpec((TB, in_dim), x_index),      # x: streamed batch tiles (full-extent K)
        pl.BlockSpec((in_dim, hidden), const),    # W1: VMEM resident (fetched once)
        pl.BlockSpec((1, hidden), const),         # gamma
        pl.BlockSpec((1, hidden), const),         # beta
        pl.BlockSpec((1, hidden), const),         # w2 as a row
        pl.BlockSpec(memory_space=pltpu.SMEM),    # b2 scalar in SMEM
    ]
    scratch_shapes = [
        pltpu.VMEM((3, hidden), f32),   # [sum(h-s); sum((h-s)^2); shift s]
        pltpu.VMEM((2, hidden), f32),   # [scale; shift] fused BN affine
    ]
    if cache_h:
        scratch_shapes.append(pltpu.VMEM((num_tiles, TB, hidden), f32))  # fc1 cache

    kernel = functools.partial(mlp_decoder_kernel, batch_size=B, tile_rows=TB,
                               cache_h=cache_h, needs_mask=needs_mask)

    out = pl.pallas_call(
        kernel,
        out_shape=jax.ShapeDtypeStruct((1, Bp), f32),
        grid_spec=pltpu.PrefetchScalarGridSpec(
            num_scalar_prefetch=0,
            grid=(2, num_tiles),                               # (phase, batch tile)
            in_specs=in_specs,
            out_specs=pl.BlockSpec((1, TB), lambda p, t: (0, t)),  # lane-dense output
            scratch_shapes=scratch_shapes,
        ),
        compiler_params=pltpu.CompilerParams(
            # Phase axis is a two-pass reduction; the tile axis shares the stats /
            # coef / h-cache scratch, so both must stay sequential.
            dimension_semantics=("arbitrary", "arbitrary"),
            vmem_limit_bytes=vmem_limit,
        ),
    )(x, w1, g, bt, w2t, b2s)

    return out.reshape(Bp, 1)[:B]


def reference(x, w1, b1, gamma, beta, w2, b2):
    h = x @ w1 + b1
    mean = jnp.mean(h, axis=0, keepdims=True)
    var = jnp.mean((h - mean) ** 2, axis=0, keepdims=True)   # biased (training mode)
    h = jnp.reshape(gamma, (1, -1)) * (h - mean) / jnp.sqrt(var + BN_EPS) \
        + jnp.reshape(beta, (1, -1))
    h = jnp.where(h >= 0, h, LEAKY_SLOPE * h)
    return h @ w2 + b2


if __name__ == "__main__":
    def run_case(key, B, in_dim, hidden, **kw):
        kx, k1, k2, k3, k4, k5, k6 = jax.random.split(key, 7)
        x = jax.random.normal(kx, (B, in_dim), dtype=jnp.float32)
        w1 = jax.random.normal(k1, (in_dim, hidden), dtype=jnp.float32) / jnp.sqrt(in_dim)
        b1 = 0.1 * jax.random.normal(k2, (1, hidden), dtype=jnp.float32)
        gamma = 1.0 + 0.1 * jax.random.normal(k3, (1, hidden), dtype=jnp.float32)
        beta = 0.1 * jax.random.normal(k4, (1, hidden), dtype=jnp.float32)
        w2 = jax.random.normal(k5, (hidden, 1), dtype=jnp.float32) / jnp.sqrt(hidden)
        b2 = 0.1 * jax.random.normal(k6, (1, 1), dtype=jnp.float32)

        out = mlp_decoder(x, w1, b1, gamma, beta, w2, b2, **kw)
        out = jax.block_until_ready(out)
        ref = reference(x, w1, b1, gamma, beta, w2, b2)
        assert out.shape == (B, 1), out.shape
        err = float(jnp.max(jnp.abs(out - ref)))
        assert jnp.allclose(out, ref, atol=2e-4, rtol=2e-4), f"mismatch, max abs err {err}"

    key = jax.random.PRNGKey(0)
    k_a, k_b, k_c = jax.random.split(key, 3)
    # Small single-tile case (typical decoder sizes for this module).
    run_case(k_a, B=8, in_dim=32, hidden=64)
    # Multi-tile + ragged last tile + lane-unaligned in_dim/hidden (no wrapper padding).
    run_case(k_b, B=300, in_dim=20, hidden=40, max_batch_tile=128)
    # Recompute-fc1 fallback path (h cache disabled via a zero budget).
    run_case(k_c, B=300, in_dim=20, hidden=40, max_batch_tile=128, hcache_budget_bytes=0)

    print("KERNEL_OK")
</pallas_src>

<mosaic_0001>
module attributes {stable_mosaic.version = 11 : i64} {
  func.func @mlp_decoder_kernel(%arg0: i32, %arg1: i32, %arg2: memref<8x32xf32, #tpu.memory_space<vmem>>, %arg3: memref<32x64xf32, #tpu.memory_space<vmem>>, %arg4: memref<1x64xf32, #tpu.memory_space<vmem>>, %arg5: memref<1x64xf32, #tpu.memory_space<vmem>>, %arg6: memref<1x64xf32, #tpu.memory_space<vmem>>, %arg7: memref<1x1xf32, #tpu.memory_space<smem>>, %arg8: memref<1x8xf32, #tpu.memory_space<vmem>>, %arg9: memref<3x64xf32, #tpu.memory_space<vmem>>, %arg10: memref<2x64xf32, #tpu.memory_space<vmem>>, %arg11: memref<1x8x64xf32, #tpu.memory_space<vmem>>) attributes {dimension_semantics = [#tpu.dimension_semantics<arbitrary>, #tpu.dimension_semantics<arbitrary>], iteration_bounds = array<i64: 2, 1>, scalar_prefetch = 0 : i64, scratch_operands = 3 : i64, tpu.core_type = #tpu.core_type<tc>, window_params = [{transform_indices = @transform_0, window_bounds = array<i64: 8, 32>}, {pipeline_mode = #tpu.pipeline_mode<synchronous>, transform_indices = @transform_1, window_bounds = array<i64: 32, 64>}, {pipeline_mode = #tpu.pipeline_mode<synchronous>, transform_indices = @transform_2, window_bounds = array<i64: 1, 64>}, {pipeline_mode = #tpu.pipeline_mode<synchronous>, transform_indices = @transform_3, window_bounds = array<i64: 1, 64>}, {pipeline_mode = #tpu.pipeline_mode<synchronous>, transform_indices = @transform_4, window_bounds = array<i64: 1, 64>}, {transform_indices = @transform_5, window_bounds = array<i64: 1, 1>}, {transform_indices = @transform_6, window_bounds = array<i64: 1, 8>}]} {
    %c0_i32 = arith.constant 0 : i32
    %0 = arith.cmpi eq, %arg0, %c0_i32 : i32
    %c0_i32_0 = arith.constant 0 : i32
    %1 = arith.cmpi eq, %arg1, %c0_i32_0 : i32
    %2 = arith.andi %0, %1 : i1
    %3 = arith.extui %2 : i1 to i32
    %c0_i32_1 = arith.constant 0 : i32
    %4 = arith.cmpi ne, %3, %c0_i32_1 : i32
    scf.if %4 {
      %cst = arith.constant 0.000000e+00 : f32
      %16 = vector.broadcast %cst : f32 to vector<3x64xf32>
      %c0 = arith.constant 0 : index
      %c0_8 = arith.constant 0 : index
      %17 = vector.load %arg9[%c0, %c0_8] : memref<3x64xf32, #tpu.memory_space<vmem>>, vector<3x64xf32>
      tpu.vector_store %arg9[%c0, %c0_8], %16 {strides = array<i32>} : memref<3x64xf32, #tpu.memory_space<vmem>>, vector<3x64xf32>,
    } else {
    }
    %c0_i32_2 = arith.constant 0 : i32
    %5 = arith.cmpi eq, %arg0, %c0_i32_2 : i32
    %6 = arith.extui %5 : i1 to i32
    %c0_i32_3 = arith.constant 0 : i32
    %7 = arith.cmpi ne, %6, %c0_i32_3 : i32
    scf.if %7 {
      %c0 = arith.constant 0 : index
      %c0_8 = arith.constant 0 : index
      %16 = vector.load %arg2[%c0, %c0_8] : memref<8x32xf32, #tpu.memory_space<vmem>>, vector<8x32xf32>
      %c0_9 = arith.constant 0 : index
      %c0_10 = arith.constant 0 : index
      %17 = vector.load %arg3[%c0_9, %c0_10] : memref<32x64xf32, #tpu.memory_space<vmem>>, vector<32x64xf32>
      %cst = arith.constant dense<0.000000e+00> : vector<8x64xf32>
      %18 = tpu.matmul %16, %17, %cst {dimension_numbers = #tpu.dot_dimension_numbers<[1], [0], [0], [1], [0, 0, 1, 1], [], []>} : vector<8x32xf32>, vector<32x64xf32>, vector<8x64xf32> -> vector<8x64xf32>
      %19 = arith.index_cast %arg1 : i32 to index
      %c0_11 = arith.constant 0 : index
      %c0_12 = arith.constant 0 : index
      %20 = vector.load %arg11[%19, %c0_11, %c0_12] : memref<1x8x64xf32, #tpu.memory_space<vmem>>, vector<1x8x64xf32>
      %21 = vector.shape_cast %20 : vector<1x8x64xf32> to vector<8x64xf32>
      %22 = vector.shape_cast %18 : vector<8x64xf32> to vector<1x8x64xf32>
      tpu.vector_store %arg11[%19, %c0_11, %c0_12], %22 {strides = array<i32>} : memref<1x8x64xf32, #tpu.memory_space<vmem>>, vector<1x8x64xf32>,
      %c0_i32_13 = arith.constant 0 : i32
      %23 = arith.cmpi eq, %arg1, %c0_i32_13 : i32
      %24 = arith.extui %23 : i1 to i32
      %c0_i32_14 = arith.constant 0 : i32
      %25 = arith.cmpi ne, %24, %c0_i32_14 : i32
      scf.if %25 {
        %46 = vector.extract_strided_slice %18 {offsets = [0, 0], sizes = [1, 64], strides = [1, 1]} : vector<8x64xf32> to vector<1x64xf32>
        %47 = vector.shape_cast %46 : vector<1x64xf32> to vector<64xf32>
        %c2_25 = arith.constant 2 : index
        %c0_26 = arith.constant 0 : index
        %48 = vector.load %arg9[%c2_25, %c0_26] : memref<3x64xf32, #tpu.memory_space<vmem>>, vector<1x64xf32>
        %49 = vector.shape_cast %48 : vector<1x64xf32> to vector<64xf32>
        %50 = vector.shape_cast %47 : vector<64xf32> to vector<1x64xf32>
        tpu.vector_store %arg9[%c2_25, %c0_26], %50 {strides = array<i32>} : memref<3x64xf32, #tpu.memory_space<vmem>>, vector<1x64xf32>,
      } else {
      }
      %c2 = arith.constant 2 : index
      %c0_15 = arith.constant 0 : index
      %26 = vector.load %arg9[%c2, %c0_15] : memref<3x64xf32, #tpu.memory_space<vmem>>, vector<1x64xf32>
      %27 = vector.shape_cast %26 : vector<1x64xf32> to vector<64xf32>
      %28 = vector.shape_cast %27 : vector<64xf32> to vector<1x64xf32>
      %29 = vector.broadcast %28 : vector<1x64xf32> to vector<8x64xf32>
      %30 = arith.subf %18, %29 : vector<8x64xf32>
      %c0_16 = arith.constant 0 : index
      %c0_17 = arith.constant 0 : index
      %31 = vector.load %arg9[%c0_16, %c0_17] : memref<3x64xf32, #tpu.memory_space<vmem>>, vector<1x64xf32>
      %32 = vector.shape_cast %31 : vector<1x64xf32> to vector<64xf32>
      %cst_18 = arith.constant dense<0.000000e+00> : vector<64xf32>
      %33 = vector.multi_reduction <add>, %30, %cst_18 [0] : vector<8x64xf32> to vector<64xf32>
      %34 = arith.addf %32, %33 : vector<64xf32>
      %c0_19 = arith.constant 0 : index
      %c0_20 = arith.constant 0 : index
      %35 = vector.load %arg9[%c0_19, %c0_20] : memref<3x64xf32, #tpu.memory_space<vmem>>, vector<1x64xf32>
      %36 = vector.shape_cast %35 : vector<1x64xf32> to vector<64xf32>
      %37 = vector.shape_cast %34 : vector<64xf32> to vector<1x64xf32>
      tpu.vector_store %arg9[%c0_19, %c0_20], %37 {strides = array<i32>} : memref<3x64xf32, #tpu.memory_space<vmem>>, vector<1x64xf32>,
      %c1 = arith.constant 1 : index
      %c0_21 = arith.constant 0 : index
      %38 = vector.load %arg9[%c1, %c0_21] : memref<3x64xf32, #tpu.memory_space<vmem>>, vector<1x64xf32>
      %39 = vector.shape_cast %38 : vector<1x64xf32> to vector<64xf32>
      %40 = arith.mulf %30, %30 : vector<8x64xf32>
      %cst_22 = arith.constant dense<0.000000e+00> : vector<64xf32>
      %41 = vector.multi_reduction <add>, %40, %cst_22 [0] : vector<8x64xf32> to vector<64xf32>
      %42 = arith.addf %39, %41 : vector<64xf32>
      %c1_23 = arith.constant 1 : index
      %c0_24 = arith.constant 0 : index
      %43 = vector.load %arg9[%c1_23, %c0_24] : memref<3x64xf32, #tpu.memory_space<vmem>>, vector<1x64xf32>
      %44 = vector.shape_cast %43 : vector<1x64xf32> to vector<64xf32>
      %45 = vector.shape_cast %42 : vector<64xf32> to vector<1x64xf32>
      tpu.vector_store %arg9[%c1_23, %c0_24], %45 {strides = array<i32>} : memref<3x64xf32, #tpu.memory_space<vmem>>, vector<1x64xf32>,
    } else {
    }
    %c1_i32 = arith.constant 1 : i32
    %8 = arith.cmpi eq, %arg0, %c1_i32 : i32
    %c0_i32_4 = arith.constant 0 : i32
    %9 = arith.cmpi eq, %arg1, %c0_i32_4 : i32
    %10 = arith.andi %8, %9 : i1
    %11 = arith.extui %10 : i1 to i32
    %c0_i32_5 = arith.constant 0 : i32
    %12 = arith.cmpi ne, %11, %c0_i32_5 : i32
    scf.if %12 {
      %c0 = arith.constant 0 : index
      %c0_8 = arith.constant 0 : index
      %16 = vector.load %arg9[%c0, %c0_8] : memref<3x64xf32, #tpu.memory_space<vmem>>, vector<1x64xf32>
      %17 = vector.shape_cast %16 : vector<1x64xf32> to vector<64xf32>
      %cst = arith.constant 1.250000e-01 : f32
      %18 = vector.broadcast %cst : f32 to vector<64xf32>
      %19 = arith.mulf %17, %18 : vector<64xf32>
      %c1 = arith.constant 1 : index
      %c0_9 = arith.constant 0 : index
      %20 = vector.load %arg9[%c1, %c0_9] : memref<3x64xf32, #tpu.memory_space<vmem>>, vector<1x64xf32>
      %21 = vector.shape_cast %20 : vector<1x64xf32> to vector<64xf32>
      %cst_10 = arith.constant 1.250000e-01 : f32
      %22 = vector.broadcast %cst_10 : f32 to vector<64xf32>
      %23 = arith.mulf %21, %22 : vector<64xf32>
      %24 = arith.mulf %19, %19 : vector<64xf32>
      %25 = arith.subf %23, %24 : vector<64xf32>
      %cst_11 = arith.constant 0.000000e+00 : f32
      %26 = vector.broadcast %cst_11 : f32 to vector<64xf32>
      %27 = arith.maximumf %25, %26 : vector<64xf32>
      %c2 = arith.constant 2 : index
      %c0_12 = arith.constant 0 : index
      %28 = vector.load %arg9[%c2, %c0_12] : memref<3x64xf32, #tpu.memory_space<vmem>>, vector<1x64xf32>
      %29 = vector.shape_cast %28 : vector<1x64xf32> to vector<64xf32>
      %30 = arith.addf %29, %19 : vector<64xf32>
      %c0_13 = arith.constant 0 : index
      %c0_14 = arith.constant 0 : index
      %31 = vector.load %arg4[%c0_13, %c0_14] : memref<1x64xf32, #tpu.memory_space<vmem>>, vector<1x64xf32>
      %32 = vector.shape_cast %31 : vector<1x64xf32> to vector<64xf32>
      %cst_15 = arith.constant 9.99999974E-6 : f32
      %33 = vector.broadcast %cst_15 : f32 to vector<64xf32>
      %34 = arith.addf %27, %33 : vector<64xf32>
      %35 = math.rsqrt %34 : vector<64xf32>
      %36 = arith.mulf %32, %35 : vector<64xf32>
      %c0_16 = arith.constant 0 : index
      %c0_17 = arith.constant 0 : index
      %37 = vector.load %arg10[%c0_16, %c0_17] : memref<2x64xf32, #tpu.memory_space<vmem>>, vector<1x64xf32>
      %38 = vector.shape_cast %37 : vector<1x64xf32> to vector<64xf32>
      %39 = vector.shape_cast %36 : vector<64xf32> to vector<1x64xf32>
      tpu.vector_store %arg10[%c0_16, %c0_17], %39 {strides = array<i32>} : memref<2x64xf32, #tpu.memory_space<vmem>>, vector<1x64xf32>,
      %c0_18 = arith.constant 0 : index
      %c0_19 = arith.constant 0 : index
      %40 = vector.load %arg5[%c0_18, %c0_19] : memref<1x64xf32, #tpu.memory_space<vmem>>, vector<1x64xf32>
      %41 = vector.shape_cast %40 : vector<1x64xf32> to vector<64xf32>
      %42 = arith.mulf %30, %36 : vector<64xf32>
      %43 = arith.subf %41, %42 : vector<64xf32>
      %c1_20 = arith.constant 1 : index
      %c0_21 = arith.constant 0 : index
      %44 = vector.load %arg10[%c1_20, %c0_21] : memref<2x64xf32, #tpu.memory_space<vmem>>, vector<1x64xf32>
      %45 = vector.shape_cast %44 : vector<1x64xf32> to vector<64xf32>
      %46 = vector.shape_cast %43 : vector<64xf32> to vector<1x64xf32>
      tpu.vector_store %arg10[%c1_20, %c0_21], %46 {strides = array<i32>} : memref<2x64xf32, #tpu.memory_space<vmem>>, vector<1x64xf32>,
    } else {
    }
    %c1_i32_6 = arith.constant 1 : i32
    %13 = arith.cmpi eq, %arg0, %c1_i32_6 : i32
    %14 = arith.extui %13 : i1 to i32
    %c0_i32_7 = arith.constant 0 : i32
    %15 = arith.cmpi ne, %14, %c0_i32_7 : i32
    scf.if %15 {
      %16 = arith.index_cast %arg1 : i32 to index
      %c0 = arith.constant 0 : index
      %c0_8 = arith.constant 0 : index
      %17 = vector.load %arg11[%16, %c0, %c0_8] : memref<1x8x64xf32, #tpu.memory_space<vmem>>, vector<1x8x64xf32>
      %18 = vector.shape_cast %17 : vector<1x8x64xf32> to vector<8x64xf32>
      %c0_9 = arith.constant 0 : index
      %c0_10 = arith.constant 0 : index
      %19 = vector.load %arg10[%c0_9, %c0_10] : memref<2x64xf32, #tpu.memory_space<vmem>>, vector<1x64xf32>
      %20 = vector.shape_cast %19 : vector<1x64xf32> to vector<64xf32>
      %21 = vector.shape_cast %20 : vector<64xf32> to vector<1x64xf32>
      %22 = vector.broadcast %21 : vector<1x64xf32> to vector<8x64xf32>
      %23 = arith.mulf %18, %22 : vector<8x64xf32>
      %c1 = arith.constant 1 : index
      %c0_11 = arith.constant 0 : index
      %24 = vector.load %arg10[%c1, %c0_11] : memref<2x64xf32, #tpu.memory_space<vmem>>, vector<1x64xf32>
      %25 = vector.shape_cast %24 : vector<1x64xf32> to vector<64xf32>
      %26 = vector.shape_cast %25 : vector<64xf32> to vector<1x64xf32>
      %27 = vector.broadcast %26 : vector<1x64xf32> to vector<8x64xf32>
      %28 = arith.addf %23, %27 : vector<8x64xf32>
      %cst = arith.constant 0.00999999977 : f32
      %29 = vector.broadcast %cst : f32 to vector<8x64xf32>
      %30 = arith.mulf %29, %28 : vector<8x64xf32>
      %31 = arith.maximumf %28, %30 : vector<8x64xf32>
      %c0_12 = arith.constant 0 : index
      %c0_13 = arith.constant 0 : index
      %32 = vector.load %arg6[%c0_12, %c0_13] : memref<1x64xf32, #tpu.memory_space<vmem>>, vector<1x64xf32>
      %33 = vector.broadcast %32 : vector<1x64xf32> to vector<8x64xf32>
      %34 = arith.mulf %31, %33 : vector<8x64xf32>
      %cst_14 = arith.constant dense<0.000000e+00> : vector<8xf32>
      %35 = vector.multi_reduction <add>, %34, %cst_14 [1] : vector<8x64xf32> to vector<8xf32>
      %c0_15 = arith.constant 0 : index
      %c0_16 = arith.constant 0 : index
      %36 = memref.load %arg7[%c0_15, %c0_16] : memref<1x1xf32, #tpu.memory_space<smem>>
      %37 = vector.broadcast %36 : f32 to vector<8xf32>
      %38 = arith.addf %35, %37 : vector<8xf32>
      %c0_17 = arith.constant 0 : index
      %c0_18 = arith.constant 0 : index
      %39 = vector.load %arg8[%c0_17, %c0_18] : memref<1x8xf32, #tpu.memory_space<vmem>>, vector<1x8xf32>
      %40 = vector.shape_cast %39 : vector<1x8xf32> to vector<8xf32>
      %41 = vector.shape_cast %38 : vector<8xf32> to vector<1x8xf32>
      tpu.vector_store %arg8[%c0_17, %c0_18], %41 {strides = array<i32>} : memref<1x8xf32, #tpu.memory_space<vmem>>, vector<1x8xf32>,
    } else {
    }
    return
  }
  func.func @transform_0(%arg0: i32, %arg1: i32) -> (i32, i32) {
    %c1_i32 = arith.constant 1 : i32
    %0 = arith.subi %c1_i32, %arg0 : i32
    %1 = arith.muli %arg1, %0 : i32
    %c0_i32 = arith.constant 0 : i32
    %c0_i32_0 = arith.constant 0 : i32
    return %1, %c0_i32 : i32, i32
  }
  func.func @transform_1(%arg0: i32, %arg1: i32) -> (i32, i32) {
    %c0_i32 = arith.constant 0 : i32
    %c0_i32_0 = arith.constant 0 : i32
    %c0_i32_1 = arith.constant 0 : i32
    return %c0_i32, %c0_i32_0 : i32, i32
  }
  func.func @transform_2(%arg0: i32, %arg1: i32) -> (i32, i32) {
    %c0_i32 = arith.constant 0 : i32
    %c0_i32_0 = arith.constant 0 : i32
    %c0_i32_1 = arith.constant 0 : i32
    return %c0_i32, %c0_i32_0 : i32, i32
  }
  func.func @transform_3(%arg0: i32, %arg1: i32) -> (i32, i32) {
    %c0_i32 = arith.constant 0 : i32
    %c0_i32_0 = arith.constant 0 : i32
    %c0_i32_1 = arith.constant 0 : i32
    return %c0_i32, %c0_i32_0 : i32, i32
  }
  func.func @transform_4(%arg0: i32, %arg1: i32) -> (i32, i32) {
    %c0_i32 = arith.constant 0 : i32
    %c0_i32_0 = arith.constant 0 : i32
    %c0_i32_1 = arith.constant 0 : i32
    return %c0_i32, %c0_i32_0 : i32, i32
  }
  func.func @transform_5(%arg0: i32, %arg1: i32) -> (i32, i32) {
    %c0_i32 = arith.constant 0 : i32
    %c0_i32_0 = arith.constant 0 : i32
    %c0_i32_1 = arith.constant 0 : i32
    return %c0_i32, %c0_i32_0 : i32, i32
  }
  func.func @transform_6(%arg0: i32, %arg1: i32) -> (i32, i32) {
    %c0_i32 = arith.constant 0 : i32
    %c0_i32_0 = arith.constant 0 : i32
    return %c0_i32, %arg1 : i32, i32
  }
}

</mosaic_0001>

<llo_original>
// kernel: tpu_custom_call.1
$region0: #{tpu_custom_call.1}
  #allocation0 [shape = 'u32[]', space=smem, size = 0x4, offset = 0x4, fixed_abs, tag = 'smem constant byte address 0x4 - core index']
  #allocation1 [shape = 'u32[144,128]{1,0:T(1,128)}', space=vmem, size = 0x12000, scoped, tag = 'internal scratch']
  #allocation2 [shape = 'f32[3,64]{1,0:T(4,128)}', space=vmem, size = 0x800, scoped, tag = 'scratch operand']
  #allocation3 [shape = 'f32[2,64]{1,0:T(2,128)}', space=vmem, size = 0x400, scoped, tag = 'scratch operand']
  #allocation4 [shape = 'f32[1,8,64]{2,1,0:T(8,128)}', space=vmem, size = 0x1000, scoped, tag = 'scratch operand']
  #allocation5 [shape = 'f32[1,1]{1,0:T(1,128)S(6)}', space=smem, size = 0x200, scoped, tag = 'scoped memory for tpu_custom_call.1']
  %s0 = inlined_call_operand.hbm [shape: f32[8,32], index: 0, kind: input, shape index: {}]
  %s1 = inlined_call_operand.hbm [shape: f32[32,64], index: 1, kind: input, shape index: {}]
  %s2 = inlined_call_operand.vmem [shape: f32[1,64], index: 2, kind: input, shape index: {}]
  %s3 = inlined_call_operand.vmem [shape: f32[1,64], index: 3, kind: input, shape index: {}]
  %s4 = inlined_call_operand.vmem [shape: f32[1,64], index: 4, kind: input, shape index: {}]
  %s5 = inlined_call_operand.<no memory space> [shape: f32[1,1], index: 5, kind: input, shape index: {}]
  %s6 = inlined_call_operand.hbm [shape: f32[1,8], index: 6, kind: output, shape index: {}]
  %s7 = sld [smem:[#allocation0]]
  $region85: #{tpu_custom_call.1} parent=0
    _
  %s9 = ssub.s32 1, %s7
  %s10 = scalar_select 0, %s9, %s7
  %11 = sst [smem:[#allocation5]] %s5
  $region1: #{tpu_custom_call.1} parent=0
    #allocation6 [shape = 'u8[8192]{0}', space=vmem, size = 0x2000, scoped, tag = 'input window, operand 0']
    #allocation7 [shape = 's32[2]{0}', space=sflag, size = 0x8, scoped, tag = 'scoped memory for tpu_custom_call.1']
    #allocation8 [shape = 's32[2]{0}', space=sflag, size = 0x8, scoped, tag = 'scoped memory for tpu_custom_call.1']
    #allocation9 [shape = 'u8[16384]{0}', space=vmem, size = 0x4000, scoped, tag = 'input window, operand 1, single buffered']
    #allocation10 [shape = 's32[1]{0}', space=sflag, size = 0x4, scoped, tag = 'scoped memory for tpu_custom_call.1']
    #allocation11 [shape = 'u8[512]{0}', space=vmem, size = 0x400, scoped, tag = 'output window, operand 0, single buffered']
    %12 = vsyncpa [#allocation7], 0
    %s13 = scalar_lea.sflag [#allocation7], 1
    %14 = vsyncpa %s13, 0
    %15 = vsyncpa [#allocation10], 0
    %16 = vsyncpa [#allocation8], 0
    loop: start=0, step=1, limit=4
    $region2: #{tpu_custom_call.1} parent=1 // loop_pre_header
      _
    $region3: #{tpu_custom_call.1} parent=1 // loop_header
      %s18 = sphi 0, %s22
      %p19 = scmp.ge.s32.totalorder %s18, 4
      %s25 = sphi 0, %s37
      %s26 = sphi 0, %s33
      %s27 = sphi 0, %s25
      %s28 = sphi 0, %s26
      %s29 = sphi 0, %s27
      %s30 = sphi 0, %s28
      %s44 = sphi 0, %s46
      %s47 = sphi 0, %s44
      %s48 = sphi 0, %s47
      %s64 = sphi 0, %s48
      %s68 = sphi 0, %s68
      %s70 = sphi 0, %s68
      %s71 = sphi 0, %s70
      %s85 = sphi 0, %s71
      %s89 = sphi 0, %s89
      %s91 = sphi 0, %s89
      %s92 = sphi 0, %s91
      %s106 = sphi 0, %s92
      %s110 = sphi 0, %s110
      %s112 = sphi 0, %s110
      %s113 = sphi 0, %s112
      %s127 = sphi 0, %s113
      %s131 = sphi 0, %s131
      %s133 = sphi 0, %s131
      %s134 = sphi 0, %s133
      %s148 = sphi 0, %s134
      %s152 = sphi 0, %s152
      %s154 = sphi 0, %s152
      %s155 = sphi 0, %s154
      %s169 = sphi 0, %s155
      %s175 = sphi 0, %s177
      %s178 = sphi 0, %s175
      %s179 = sphi 0, %s178
      %s195 = sphi 0, %s179
    $region4: #{tpu_custom_call.1} parent=1 // loop_header_branch
      %21 = sbr.rel (%p19) target = $region8
    $region5: #{tpu_custom_call.1} parent=1 // loop_body
      %s23 = ssub.s32 %s18, 1
      %s24 = ssub.s32 %s18, 2
      %s31 = sadd.s32 1, %s26
      %p32 = scmp.ge.s32.totalorder %s31, 1
      %s33 = scalar_select %p32, 0, %s31
      %s34 = sadd.s32 1, %s25
      %s35 = scalar_select %p32, %s34, %s25
      %p36 = scmp.ge.s32.totalorder %s35, 2
      %s37 = scalar_select %p36, 0, %s35
      %s38 = ssub.s32 1, %s25
      %s39 = smul.u32 %s26, %s38
      %s40 = ssub.s32 1, %s37
      %s41 = smul.u32 %s33, %s40
      %s42 = ssub.s32 %s39, %s41
      %p43 = scmp.eq.s32.totalorder %s42, 0
      %s45 = sadd.s32 %s44, 1
      %s46 = scalar_select %p43, %s44, %s45
      %p49 = pneg %p43
      %p50 = scmp.eq.s32.totalorder %s18, 1
      %p51 = por %p49, %p50
      %p52 = scmp.ne.s32.totalorder %s44, %s47
      %p53 = scmp.eq.s32.totalorder %s18, 0
      %p54 = por %p52, %p53
      %p55 = scmp.ne.s32.totalorder %s44, %s47
      %p56 = scmp.eq.s32.totalorder %s23, 1
      %p57 = por %p55, %p56
      %p58 = scmp.ne.s32.totalorder %s47, %s48
      %p59 = scmp.eq.s32.totalorder %s23, 0
      %p60 = por %p58, %p59
      %p61 = scmp.ne.s32.totalorder %s47, %s48
      %p62 = scmp.eq.s32.totalorder %s24, 1
      %p63 = por %p61, %p62
      %p65 = scmp.ne.s32.totalorder %s48, %s64
      %p66 = scmp.eq.s32.totalorder %s24, 0
      %p67 = por %p65, %p66
      %s69 = sadd.s32 %s68, 1
      %p72 = scmp.eq.s32.totalorder %s18, 1
      %p73 = scmp.ne.s32.totalorder %s68, %s70
      %p74 = scmp.eq.s32.totalorder %s18, 0
      %p75 = por %p73, %p74
      %p76 = scmp.ne.s32.totalorder %s68, %s70
      %p77 = scmp.eq.s32.totalorder %s23, 1
      %p78 = por %p76, %p77
      %p79 = scmp.ne.s32.totalorder %s70, %s71
      %p80 = scmp.eq.s32.totalorder %s23, 0
      %p81 = por %p79, %p80
      %p82 = scmp.ne.s32.totalorder %s70, %s71
      %p83 = scmp.eq.s32.totalorder %s24, 1
      %p84 = por %p82, %p83
      %p86 = scmp.ne.s32.totalorder %s71, %s85
      %p87 = scmp.eq.s32.totalorder %s24, 0
      %p88 = por %p86, %p87
      %s90 = sadd.s32 %s89, 1
      %p93 = scmp.eq.s32.totalorder %s18, 1
      %p94 = scmp.ne.s32.totalorder %s89, %s91
      %p95 = scmp.eq.s32.totalorder %s18, 0
      %p96 = por %p94, %p95
      %p97 = scmp.ne.s32.totalorder %s89, %s91
      %p98 = scmp.eq.s32.totalorder %s23, 1
      %p99 = por %p97, %p98
      %p100 = scmp.ne.s32.totalorder %s91, %s92
      %p101 = scmp.eq.s32.totalorder %s23, 0
      %p102 = por %p100, %p101
      %p103 = scmp.ne.s32.totalorder %s91, %s92
      %p104 = scmp.eq.s32.totalorder %s24, 1
      %p105 = por %p103, %p104
      %p107 = scmp.ne.s32.totalorder %s92, %s106
      %p108 = scmp.eq.s32.totalorder %s24, 0
      %p109 = por %p107, %p108
      %s111 = sadd.s32 %s110, 1
      %p114 = scmp.eq.s32.totalorder %s18, 1
      %p115 = scmp.ne.s32.totalorder %s110, %s112
      %p116 = scmp.eq.s32.totalorder %s18, 0
      %p117 = por %p115, %p116
      %p118 = scmp.ne.s32.totalorder %s110, %s112
      %p119 = scmp.eq.s32.totalorder %s23, 1
      %p120 = por %p118, %p119
      %p121 = scmp.ne.s32.totalorder %s112, %s113
      %p122 = scmp.eq.s32.totalorder %s23, 0
      %p123 = por %p121, %p122
      %p124 = scmp.ne.s32.totalorder %s112, %s113
      %p125 = scmp.eq.s32.totalorder %s24, 1
      %p126 = por %p124, %p125
      %p128 = scmp.ne.s32.totalorder %s113, %s127
      %p129 = scmp.eq.s32.totalorder %s24, 0
      %p130 = por %p128, %p129
      %s132 = sadd.s32 %s131, 1
      %p135 = scmp.eq.s32.totalorder %s18, 1
      %p136 = scmp.ne.s32.totalorder %s131, %s133
      %p137 = scmp.eq.s32.totalorder %s18, 0
      %p138 = por %p136, %p137
      %p139 = scmp.ne.s32.totalorder %s131, %s133
      %p140 = scmp.eq.s32.totalorder %s23, 1
      %p141 = por %p139, %p140
      %p142 = scmp.ne.s32.totalorder %s133, %s134
      %p143 = scmp.eq.s32.totalorder %s23, 0
      %p144 = por %p142, %p143
      %p145 = scmp.ne.s32.totalorder %s133, %s134
      %p146 = scmp.eq.s32.totalorder %s24, 1
      %p147 = por %p145, %p146
      %p149 = scmp.ne.s32.totalorder %s134, %s148
      %p150 = scmp.eq.s32.totalorder %s24, 0
      %p151 = por %p149, %p150
      %s153 = sadd.s32 %s152, 1
      %p156 = scmp.eq.s32.totalorder %s18, 1
      %p157 = scmp.ne.s32.totalorder %s152, %s154
      %p158 = scmp.eq.s32.totalorder %s18, 0
      %p159 = por %p157, %p158
      %p160 = scmp.ne.s32.totalorder %s152, %s154
      %p161 = scmp.eq.s32.totalorder %s23, 1
      %p162 = por %p160, %p161
      %p163 = scmp.ne.s32.totalorder %s154, %s155
      %p164 = scmp.eq.s32.totalorder %s23, 0
      %p165 = por %p163, %p164
      %p166 = scmp.ne.s32.totalorder %s154, %s155
      %p167 = scmp.eq.s32.totalorder %s24, 1
      %p168 = por %p166, %p167
      %p170 = scmp.ne.s32.totalorder %s155, %s169
      %p171 = scmp.eq.s32.totalorder %s24, 0
      %p172 = por %p170, %p171
      %s173 = ssub.s32 %s26, %s33
      %p174 = scmp.eq.s32.totalorder %s173, 0
      %s176 = sadd.s32 %s175, 1
      %s177 = scalar_select %p174, %s175, %s176
      %p180 = pneg %p174
      %p181 = scmp.eq.s32.totalorder %s18, 1
      %p182 = por %p180, %p181
      %p183 = scmp.ne.s32.totalorder %s175, %s178
      %p184 = scmp.eq.s32.totalorder %s18, 0
      %p185 = por %p183, %p184
      %p186 = scmp.ne.s32.totalorder %s175, %s178
      %p187 = scmp.eq.s32.totalorder %s23, 1
      %p188 = por %p186, %p187
      %p189 = scmp.ne.s32.totalorder %s178, %s179
      %p190 = scmp.eq.s32.totalorder %s23, 0
      %p191 = por %p189, %p190
      %p192 = scmp.ne.s32.totalorder %s178, %s179
      %p193 = scmp.eq.s32.totalorder %s24, 1
      %p194 = por %p192, %p193
      %p196 = scmp.ne.s32.totalorder %s179, %s195
      %p197 = scmp.eq.s32.totalorder %s24, 0
      %p198 = por %p196, %p197
      %p199 = scmp.le.s32.totalorder 1, %s18
      %p200 = scmp.lt.s32.totalorder %s18, 3
      %p201 = pnand %p199, %p200
      %p202 = pneg %p201
      // Predicated region
      $region9: #{tpu_custom_call.1} parent=5 // pred_check
        _
      $region10: #{tpu_custom_call.1} parent=5 // pred_check_branch
        %204 = sbr.rel (%p201) target = $region12
      $region11: #{tpu_custom_call.1} parent=5 // pred_region
        %s205 = ssub.s32 %s18, 1
        // Predicated region
        $region13: #{tpu_custom_call.1} parent=11 // pred_check
          %p206 = pneg %p81
        $region14: #{tpu_custom_call.1} parent=11 // pred_check_branch
          %208 = sbr.rel (%p206) target = $region16
        $region15: #{tpu_custom_call.1} parent=11 // pred_region
          %s210 = ssub.s32 512, 512
          %211 = vsyncadd [#allocation10], %s210
          %s212 = sshll.u32 [#allocation9], 4
          %s213 = int_to_ptr.vmem [resolvable:$true] %s212
          %218 = dma.hbm_to_vmem [thread:$0]  %s1, 512, %s213, [#allocation10], 128, 128, 8
        $region16: #{tpu_custom_call.1} parent=11 // pred_fallthru
          _
        // Predicated region
        $region17: #{tpu_custom_call.1} parent=11 // pred_check
          %p219 = pneg %p102
        $region18: #{tpu_custom_call.1} parent=11 // pred_check_branch
          %221 = sbr.rel (%p219) target = $region20
        $region19: #{tpu_custom_call.1} parent=11 // pred_region
          _
        $region20: #{tpu_custom_call.1} parent=11 // pred_fallthru
          _
        // Predicated region
        $region21: #{tpu_custom_call.1} parent=11 // pred_check
          %p222 = pneg %p123
        $region22: #{tpu_custom_call.1} parent=11 // pred_check_branch
          %224 = sbr.rel (%p222) target = $region24
        $region23: #{tpu_custom_call.1} parent=11 // pred_region
          _
        $region24: #{tpu_custom_call.1} parent=11 // pred_fallthru
          _
        // Predicated region
        $region25: #{tpu_custom_call.1} parent=11 // pred_check
          %p225 = pneg %p144
        $region26: #{tpu_custom_call.1} parent=11 // pred_check_branch
          %227 = sbr.rel (%p225) target = $region28
        $region27: #{tpu_custom_call.1} parent=11 // pred_region
          _
        $region28: #{tpu_custom_call.1} parent=11 // pred_fallthru
          _
        // Predicated region
        $region29: #{tpu_custom_call.1} parent=11 // pred_check
          %p228 = pneg %p165
        $region30: #{tpu_custom_call.1} parent=11 // pred_check_branch
          %230 = sbr.rel (%p228) target = $region32
        $region31: #{tpu_custom_call.1} parent=11 // pred_region
          _
        $region32: #{tpu_custom_call.1} parent=11 // pred_fallthru
          _
      $region12: #{tpu_custom_call.1} parent=5 // pred_fallthru
        _
      %p231 = scmp.lt.s32.totalorder %s18, 2
      // Predicated region
      $region33: #{tpu_custom_call.1} parent=5 // pred_check
        %p232 = pneg %p231
      $region34: #{tpu_custom_call.1} parent=5 // pred_check_branch
        %234 = sbr.rel (%p232) target = $region36
      $region35: #{tpu_custom_call.1} parent=5 // pred_region
        // Predicated region
        $region37: #{tpu_custom_call.1} parent=35 // pred_check
          %p235 = pneg %p54
        $region38: #{tpu_custom_call.1} parent=35 // pred_check_branch
          %237 = sbr.rel (%p235) target = $region40
        $region39: #{tpu_custom_call.1} parent=35 // pred_region
          %s238 = sand.u32 %s44, 1
          %s239 = scalar_lea.sflag [#allocation7], %s238
          %s240 = sand.u32 %s44, 1
          %s241 = smul.addr %s240, 8
          %s242 = scalar_lea.vmem [#allocation6], %s241
          %s243 = ssub.s32 1, %s25
          %s244 = smul.u32 %s26, %s243
          %s246 = ssub.s32 128, 128
          %247 = vsyncadd %s239, %s246
          %s248 = smul.addr %s244, 128
          %s249 = scalar_lea.hbm %s0, %s248
          %s251 = sshll.u32 %s242, 4
          %s252 = int_to_ptr.vmem [resolvable:$true] %s251
          %254 = dma.hbm_to_vmem [thread:$0]  %s249, 128, %s252, %s239
        $region40: #{tpu_custom_call.1} parent=35 // pred_fallthru
          _
      $region36: #{tpu_custom_call.1} parent=5 // pred_fallthru
        _
      %p255 = scmp.le.s32.totalorder 1, %s18
      %p256 = scmp.lt.s32.totalorder %s18, 3
      %p257 = pnand %p255, %p256
      %p258 = pneg %p257
      // Predicated region
      $region41: #{tpu_custom_call.1} parent=5 // pred_check
        _
      $region42: #{tpu_custom_call.1} parent=5 // pred_check_branch
        %260 = sbr.rel (%p257) target = $region44
      $region43: #{tpu_custom_call.1} parent=5 // pred_region
        %s261 = ssub.s32 %s18, 1
        %s262 = sand.u32 %s47, 1
        %s263 = scalar_lea.sflag [#allocation7], %s262
        %s264 = sand.u32 %s47, 1
        %s265 = smul.addr %s264, 8
        %s266 = scalar_lea.vmem [#allocation6], %s265
        // Predicated region
        $region45: #{tpu_custom_call.1} parent=43 // pred_check
          %p267 = pneg %p60
        $region46: #{tpu_custom_call.1} parent=43 // pred_check_branch
          %269 = sbr.rel (%p267) target = $region48
        $region47: #{tpu_custom_call.1} parent=43 // pred_region
          %270 = dma.done %s263, 128
        $region48: #{tpu_custom_call.1} parent=43 // pred_fallthru
          _
        // Predicated region
        $region49: #{tpu_custom_call.1} parent=43 // pred_check
          %p271 = pneg %p81
        $region50: #{tpu_custom_call.1} parent=43 // pred_check_branch
          %273 = sbr.rel (%p271) target = $region52
        $region51: #{tpu_custom_call.1} parent=43 // pred_region
          %274 = dma.done [#allocation10], 512
        $region52: #{tpu_custom_call.1} parent=43 // pred_fallthru
          _
        %s275 = sand.u32 %s47, 1
        %s276 = scalar_lea.sflag [#allocation7], %s275
        %s277 = sand.u32 %s47, 1
        %s278 = smul.addr %s277, 8
        %s279 = scalar_lea.vmem [#allocation6], %s278
        %p280 = pneg %p60
        %p281 = pneg %p57
        %p282 = pneg %p81
        %p283 = pneg %p78
        %p284 = pneg %p102
        %p285 = pneg %p99
        %p286 = pneg %p123
        %p287 = pneg %p120
        %p288 = pneg %p144
        %p289 = pneg %p141
        %p290 = pneg %p165
        %p291 = pneg %p162
        %p292 = pneg %p191
        %p293 = pneg %p188
        %s294 = ssub.s32 1, %s27
        %s295 = smul.u32 %s28, %s294
        %p296 = scmp.eq.s32.totalorder %s27, 0
        %p297 = scmp.eq.s32.totalorder %s28, 0
        %p298 = pnand %p296, %p297
        %p299 = pneg %p298
        // Predicated region
        $region53: #{tpu_custom_call.1} parent=43 // pred_check
          _
        $region54: #{tpu_custom_call.1} parent=43 // pred_check_branch
          %301 = sbr.rel (%p298) target = $region56
        $region55: #{tpu_custom_call.1} parent=43 // pred_region
          %vm302 = vcmask 518144
          %303 = vst.msk [vmem:[#allocation2] sm:$0x7] %vm302, 0.0
        $region56: #{tpu_custom_call.1} parent=43 // pred_fallthru
          _
        // Predicated region
        $region57: #{tpu_custom_call.1} parent=43 // pred_check
          %p304 = pneg %p296
        $region58: #{tpu_custom_call.1} parent=43 // pred_check_branch
          %306 = sbr.rel (%p304) target = $region60
        $region59: #{tpu_custom_call.1} parent=43 // pred_region
          %v307 = vld [vmem:[%s266] sm:$0xff]
          %v308 = vld [vmem:[#allocation9] sm:$0xff]
          %v309 = vld [vmem:[#allocation9 + $0x8] sm:$0xff]
          %v310 = vld [vmem:[#allocation9 + $0x10] sm:$0xff]
          %v311 = vld [vmem:[#allocation9 + $0x18] sm:$0xff]
          %vm312 = vcmask 261120
          %v314 = vsel %vm312, %v307, 0
          %316 = vmatprep.subr.mxu0 0.0
          %317 = vmatpush1.msra.mxu0 0.0
          %318 = vmatprep.subr.mxu0 0.0
          %319 = vmatpush1.msra.mxu0 0.0
          %320 = vmatprep.subr.mxu0 0.0
          %321 = vmatpush1.msra.mxu0 0.0
          %322 = vmatprep.subr.mxu0 0.0
          %323 = vmatpush1.msra.mxu0 0.0
          %324 = vmatprep.subr.mxu0 0.0
          %325 = vmatpush1.msra.mxu0 0.0
          %326 = vmatprep.subr.mxu0 0.0
          %327 = vmatpush1.msra.mxu0 0.0
          %328 = vmatprep.subr.mxu0 0.0
          %329 = vmatpush1.msra.mxu0 0.0
          %330 = vmatprep.subr.mxu0 0.0
          %331 = vmatpush1.msra.mxu0 0.0
          %332 = vmatprep.subr.mxu0 0.0
          %333 = vmatpush1.msra.mxu0 0.0
          %334 = vmatprep.subr.mxu0 0.0
          %335 = vmatpush1.msra.mxu0 0.0
          %336 = vmatprep.subr.mxu0 0.0
          %337 = vmatpush1.msra.mxu0 0.0
          %338 = vmatprep.subr.mxu0 0.0
          %339 = vmatpush1.msra.mxu0 0.0
          %340 = vmatprep.subr.mxu0 0.0
          %341 = vmatpush1.msra.mxu0 %v311
          %342 = vmatprep.subr.mxu0 0.0
          %343 = vmatpush1.msra.mxu0 %v310
          %344 = vmatprep.subr.mxu0 0.0
          %345 = vmatpush1.msra.mxu0 %v309
          %346 = vmatprep.subr.mxu0 0.0
          %347 = vmatpush1.msra.mxu0 %v308
          %348 = vmatprep.subr.mxu0 0.0
          %349 = vmatpush2.msra.mxu0 0.0
          %350 = vmatprep.subr.mxu0 0.0
          %351 = vmatpush2.msra.mxu0 0.0
          %352 = vmatprep.subr.mxu0 0.0
          %353 = vmatpush2.msra.mxu0 0.0
          %354 = vmatprep.subr.mxu0 0.0
          %355 = vmatpush2.msra.mxu0 0.0
          %356 = vmatprep.subr.mxu0 0.0
          %357 = vmatpush2.msra.mxu0 0.0
          %358 = vmatprep.subr.mxu0 0.0
          %359 = vmatpush2.msra.mxu0 0.0
          %360 = vmatprep.subr.mxu0 0.0
          %361 = vmatpush2.msra.mxu0 0.0
          %362 = vmatprep.subr.mxu0 0.0
          %363 = vmatpush2.msra.mxu0 0.0
          %364 = vmatprep.subr.mxu0 0.0
          %365 = vmatpush2.msra.mxu0 0.0
          %366 = vmatprep.subr.mxu0 0.0
          %367 = vmatpush2.msra.mxu0 0.0
          %368 = vmatprep.subr.mxu0 0.0
          %369 = vmatpush2.msra.mxu0 0.0
          %370 = vmatprep.subr.mxu0 0.0
          %371 = vmatpush2.msra.mxu0 0.0
          %372 = vmatprep.subr.mxu0 0.0
          %373 = vmatpush2.msra.mxu0 0.0
          %374 = vmatprep.subr.mxu0 0.0
          %375 = vmatpush2.msra.mxu0 0.0
          %376 = vmatprep.subr.mxu0 0.0
          %377 = vmatpush2.msra.mxu0 0.0
          %378 = vmatprep.subr.mxu0 0.0
          %379 = vmatpush2.msra.mxu0 0.0
          %380 = vmatprep.mubr.f32.mxu0 0.0
          %381 = vmatmul.mubr.f32.gmra.mxu0 %v314
          %v382 = vpop.f32.mrf.mxu0
          %v383 = vadd.f32 0.0, %v382
          %v384 = vpop.f32.mrf.mxu0
          %385 = vdwg.mxu0
          %s386 = smul.u32 %s28, 8
          %s387 = scalar_lea.vmem [#allocation4], %s386
          %vm388 = vcmask 523264
          %389 = vst.msk [vmem:[%s387] sm:$0xff] %vm388, %v383
          // Predicated region
          $region61: #{tpu_custom_call.1} parent=59 // pred_check
            %p390 = pneg %p297
          $region62: #{tpu_custom_call.1} parent=59 // pred_check_branch
            %392 = sbr.rel (%p390) target = $region64
          $region63: #{tpu_custom_call.1} parent=59 // pred_region
            %vm393 = vcmask 516096
            %394 = vst.msk [vmem:[#allocation2 + $0x2] sm:$0x1] %vm393, %v383
          $region64: #{tpu_custom_call.1} parent=59 // pred_fallthru
            _
          %v395 = vld [vmem:[#allocation2 + $0x2] sm:$0x1]
          %v396 = vlaneseq
          %v397 = vshrl.u32 %v396, 7
          %v398 = vsub.s32 0, %v397
          %v399 = vrot.slane %v395, %v398
          %v400 = vsub.f32 %v383, %v399
          %v401 = vld [vmem:[#allocation2] sm:$0x1]
          %v402 = vsel %vm388, %v400, 0.0
          %v403 = vrot.slane %v402, 4
          %v404 = vadd.f32 %v402, %v403
          %v405 = vrot.slane %v404, 2
          %v406 = vadd.f32 %v404, %v405
          %v407 = vrot.slane %v406, 1
          %v408 = vadd.f32 %v406, %v407
          %v409 = vadd.f32 %v401, %v408
          %vm410 = vcmask 516096
          %411 = vst.msk [vmem:[#allocation2] sm:$0x1] %vm410, %v409
          %v412 = vld [vmem:[#allocation2 + $0x1] sm:$0x1]
          %v413 = vmul.f32 %v400, %v400
          %v414 = vsel %vm388, %v413, 0.0
          %v415 = vrot.slane %v414, 4
          %v416 = vadd.f32 %v414, %v415
          %v417 = vrot.slane %v416, 2
          %v418 = vadd.f32 %v416, %v417
          %v419 = vrot.slane %v418, 1
          %v420 = vadd.f32 %v418, %v419
          %v421 = vadd.f32 %v412, %v420
          %422 = vst.msk [vmem:[#allocation2 + $0x1] sm:$0x1] %vm410, %v421
        $region60: #{tpu_custom_call.1} parent=43 // pred_fallthru
          _
        %p423 = scmp.eq.s32.totalorder %s27, 1
        %p424 = pnand %p423, %p297
        %p425 = pneg %p424
        // Predicated region
        $region65: #{tpu_custom_call.1} parent=43 // pred_check
          _
        $region66: #{tpu_custom_call.1} parent=43 // pred_check_branch
          %427 = sbr.rel (%p424) target = $region68
        $region67: #{tpu_custom_call.1} parent=43 // pred_region
          %v428 = vld [vmem:[#allocation2] sm:$0x1]
          %v429 = vmul.f32 %v428, 0.125
          %v430 = vld [vmem:[#allocation2 + $0x1] sm:$0x1]
          %v431 = vmul.f32 %v430, 0.125
          %v432 = vmul.f32 %v429, %v429
          %v433 = vsub.f32 %v431, %v432
          %v434 = vmax.f32 %v433, 0.0
          %v435 = vld [vmem:[#allocation2 + $0x2] sm:$0x1]
          %v436 = vadd.f32 %v435, %v429
          %v437 = vld [vmem:[%s2] sm:$0x1]
          %v438 = vadd.f32 %v434, 1e-05
          %v439 = vrsqrt.pop %v438
          %v440 = vmul.f32 %v437, %v439
          %vm441 = vcmask 516096
          %442 = vst.msk [vmem:[#allocation3] sm:$0x1] %vm441, %v440
          %v443 = vld [vmem:[%s3] sm:$0x1]
          %v444 = vmul.f32 %v436, %v440
          %v445 = vsub.f32 %v443, %v444
          %446 = vst.msk [vmem:[#allocation3 + $0x1] sm:$0x1] %vm441, %v445
        $region68: #{tpu_custom_call.1} parent=43 // pred_fallthru
          _
        // Predicated region
        $region69: #{tpu_custom_call.1} parent=43 // pred_check
          %p447 = pneg %p423
        $region70: #{tpu_custom_call.1} parent=43 // pred_check_branch
          %449 = sbr.rel (%p447) target = $region72
        $region71: #{tpu_custom_call.1} parent=43 // pred_region
          %s450 = smul.u32 %s28, 8
          %s451 = scalar_lea.vmem [#allocation4], %s450
          %v452 = vld [vmem:[%s451] sm:$0xff]
          %v453 = vld [vmem:[#allocation3] sm:$0x1]
          %v454 = vlaneseq
          %v455 = vshrl.u32 %v454, 7
          %v456 = vsub.s32 0, %v455
          %v457 = vrot.slane %v453, %v456
          %v458 = vmul.f32 %v452, %v457
          %v459 = vld [vmem:[#allocation3 + $0x1] sm:$0x1]
          %v460 = vlaneseq
          %v461 = vshrl.u32 %v460, 7
          %v462 = vsub.s32 0, %v461
          %v463 = vrot.slane %v459, %v462
          %v464 = vadd.f32 %v458, %v463
          %v465 = vmul.f32 %v464, 0.01
          %v466 = vmax.f32 %v464, %v465
          %v467 = vld [vmem:[%s4] sm:$0x1]
          %v469 = vlaneseq
          %v470 = vshrl.u32 %v469, 7
          %v471 = vsub.s32 0, %v470
          %v472 = vrot.slane %v467, %v471
          %v474 = vmul.f32 %v466, %v472
          %vm475 = vcmask 523264
          %v476 = vsel %vm475, %v474, 0.0
          %477 = vadd.xlane.f32.xlu0 %v476
          %v478 = vpop.xlane.xlu0 %477
          %s479 = sld [smem:[#allocation5]]
          %v480 = vstv %s479
          %v481 = vadd.f32 %v478, %v480
          %v483 = vlaneseq
          %v484 = vand.u32 %v483, 127
          %v485 = vlaneseq
          %v486 = vshrl.u32 %v485, 7
          %v487 = vsub.s32 %v484, %v486
          %v488 = vrot.slane %v481, %v487
          %vm490 = vcmask 57344
          %491 = vst.msk [vmem:[#allocation11] sm:$0x1] %vm490, %v488
        $region72: #{tpu_custom_call.1} parent=43 // pred_fallthru
          _
        // Predicated region
        $region73: #{tpu_custom_call.1} parent=43 // pred_check
          %p492 = pneg %p188
        $region74: #{tpu_custom_call.1} parent=43 // pred_check_branch
          %494 = sbr.rel (%p492) target = $region76
        $region75: #{tpu_custom_call.1} parent=43 // pred_region
          %s496 = ssub.s32 16, 16
          %497 = vsyncadd [#allocation8], %s496
          %s498 = smul.addr %s28, 16
          %s499 = scalar_lea.hbm %s6, %s498
          %s501 = sshll.u32 [#allocation11], 4
          %s502 = int_to_ptr.vmem [resolvable:$true] %s501
          %504 = dma.vmem_to_hbm [thread:$0]  %s502, 16, %s499, [#allocation8]
        $region76: #{tpu_custom_call.1} parent=43 // pred_fallthru
          _
        // Predicated region
        $region77: #{tpu_custom_call.1} parent=43 // pred_check
          %p505 = pneg %p188
        $region78: #{tpu_custom_call.1} parent=43 // pred_check_branch
          %507 = sbr.rel (%p505) target = $region80
        $region79: #{tpu_custom_call.1} parent=43 // pred_region
          %508 = dma.done [#allocation8], 16
        $region80: #{tpu_custom_call.1} parent=43 // pred_fallthru
          _
      $region44: #{tpu_custom_call.1} parent=5 // pred_fallthru
        _
      %p509 = scmp.le.s32.totalorder 2, %s18
      // Predicated region
      $region81: #{tpu_custom_call.1} parent=5 // pred_check
        %p510 = pneg %p509
      $region82: #{tpu_custom_call.1} parent=5 // pred_check_branch
        %512 = sbr.rel (%p510) target = $region84
      $region83: #{tpu_custom_call.1} parent=5 // pred_region
        %s513 = ssub.s32 %s18, 2
      $region84: #{tpu_custom_call.1} parent=5 // pred_fallthru
        _
    $region6: #{tpu_custom_call.1} parent=1 // loop_footer
      %s22 = sadd.s32 1, %s18
    $region7: #{tpu_custom_call.1} parent=1 // loop_footer_branch
      %17 = sbr.rel target = $region3
    $region8: #{tpu_custom_call.1} parent=1 // loop_exit
      _
    %514 = vsyncpa [#allocation7], 1
    %s515 = scalar_lea.sflag [#allocation7], 1
    %516 = vsyncpa %s515, 1
    %517 = vsyncpa [#allocation10], 1
    %518 = vsyncpa [#allocation8], 1
    %s519 = scalar_lea.sflag [#allocation8], 1
    %520 = vsyncpa %s519, 1

</llo_original>
